<compile_context>
chip_gen: v7x
topology: tpu7x:2x2x1
jax: 0.10.0
libtpu: 0.0.40
codegen_flags: <defaults>
</compile_context>

<pallas_src>
import functools
import math

import jax
import jax.numpy as jnp
from jax import lax
from jax.experimental import pallas as pl
from jax.experimental.pallas import tpu as pltpu


def _nonlocal_flash_kernel(theta_ref, phit_ref, g_ref, o_ref,
                           m_ref, l_ref, acc_ref, *, hw, tk, mask_keys):
    """One (batch, q-tile, k-tile) grid step of tiled non-local attention.

    Shapes (Ci = padded inter_channels, C = in_channels):
      theta_ref: (1, Ci, TQ)  pre-projected, pre-scaled theta for the q tile
      phit_ref:  (1, TK, Ci)  pre-projected phi, stored transposed, key tile
      g_ref:     (1, C,  TK)  raw x slab (values), key tile
      o_ref:     (1, C,  TQ)  output slab
      m_ref:     (1, TQ)      scratch: running row max (f32)
      l_ref:     (1, TQ)      scratch: running softmax denominator (f32)
      acc_ref:   (C, TQ)      scratch: un-normalized output accumulator (f32)
    """
    ki = pl.program_id(2)
    nk = pl.num_programs(2)

    @pl.when(ki == 0)
    def _init():
        m_ref[...] = jnp.full_like(m_ref, -jnp.inf)
        l_ref[...] = jnp.zeros_like(l_ref)
        acc_ref[...] = jnp.zeros_like(acc_ref)

    phi_t = phit_ref[0]                                       # (TK, Ci)
    theta = theta_ref[0]                                      # (Ci, TQ)
    g = g_ref[0]                                              # (C, TK)

    # s[k, q] = sum_ci phi[ci, k] * theta[ci, q] — MXU-native orientation,
    # no in-kernel transposes.  Scale 1/sqrt(Ci) is folded into theta.
    s = jnp.dot(phi_t, theta, preferred_element_type=jnp.float32)   # (TK, TQ)

    if mask_keys:
        # Padded key positions (global index >= hw) must not contribute to
        # the softmax (their phi equals the bias, not zero).
        k_idx = lax.broadcasted_iota(jnp.int32, s.shape, 0) + ki * tk
        s = jnp.where(k_idx < hw, s, -1e30)

    # Online softmax over the key axis (sublane axis of s); m/l stay in the
    # (1, TQ) lane layout that broadcasts freely against the (C, TQ) acc.
    m_prev = m_ref[...]                                       # (1, TQ)
    m_new = jnp.maximum(m_prev, jnp.max(s, axis=0, keepdims=True))
    alpha = jnp.exp(m_prev - m_new)                           # (1, TQ)
    p = jnp.exp(s - m_new)                                    # (TK, TQ), f32
    l_ref[...] = alpha * l_ref[...] + jnp.sum(p, axis=0, keepdims=True)
    m_ref[...] = m_new

    # acc[c, q] += sum_k g[c, k] * p[k, q]   (MXU matmul, f32 accumulation).
    acc_ref[...] = alpha * acc_ref[...] + jnp.dot(
        g, p.astype(g.dtype), preferred_element_type=jnp.float32)

    @pl.when(ki == nk - 1)
    def _finalize():
        inv_l = pl.reciprocal(l_ref[...], approx=False)       # exact, once/q-tile
        o_ref[0] = (acc_ref[...] * inv_l).astype(o_ref.dtype)


def _pick_tile(hw_pad, pref):
    """Largest multiple of 128 that is <= pref and divides hw_pad (hw_pad % 128 == 0)."""
    t = max(128, (min(pref, hw_pad) // 128) * 128)
    while hw_pad % t:
        t -= 128
    return t


def nonlocal_filter(x_nchw, w_theta, b_theta, w_phi, b_phi, *,
                    tq=256, tk=256, vmem_limit_bytes=None):
    """x_nchw: (B, C, H, W). w_theta/w_phi: (Ci, C). b_theta/b_phi: (Ci,).

    tq/tk: query/key tile sizes over padded HW (multiples of 128).
    Tuning guide: v6e -> tq=512, tk=256 (raise vmem_limit_bytes accordingly);
    v5e -> tk=512; v7x -> keep tq=tk=256 (64 MiB VMEM per TensorCore).
    """
    B, C, H, W = x_nchw.shape
    Ci = w_theta.shape[0]
    HW = H * W
    dtype = x_nchw.dtype

    # Pure reshape — no HBM transpose of x; spatial positions are the lane dim.
    x_flat = x_nchw.reshape(B, C, HW)

    # Pad HW to a lane multiple for lane-dense tiles and unmasked stores.
    hw_pad = ((HW + 127) // 128) * 128
    if hw_pad != HW:
        x_flat = jnp.pad(x_flat, ((0, 0), (0, 0), (0, hw_pad - HW)))

    # Pad Ci to a sublane multiple (zero rows contribute nothing to the scores).
    ci_pad = max(8, ((Ci + 7) // 8) * 8)
    scale = 1.0 / math.sqrt(Ci)

    def pad_rows(a, rows):
        return jnp.zeros((rows,) + a.shape[1:], a.dtype).at[:a.shape[0]].set(a)

    wt = pad_rows(w_theta.astype(jnp.float32) * scale, ci_pad)   # (ci_pad, C)
    bt = pad_rows(b_theta.astype(jnp.float32) * scale, ci_pad)   # (ci_pad,)
    wp = pad_rows(w_phi.astype(jnp.float32), ci_pad)
    bp = pad_rows(b_phi.astype(jnp.float32), ci_pad)

    hp = lax.Precision.HIGHEST
    xf = x_flat.astype(jnp.float32)
    # theta (1/sqrt(Ci) folded in): (B, ci_pad, hw_pad) — queries on the lane axis.
    theta = (jnp.einsum('ic,bcs->bis', wt, xf, precision=hp)
             + bt[None, :, None]).astype(dtype)
    # phi, stored transposed: (B, hw_pad, ci_pad) — keeps the in-kernel score
    # matmul in (M,K)@(K,N) orientation.
    phi_t = (jnp.einsum('bcs,ic->bsi', xf, wp, precision=hp)
             + bp[None, None, :]).astype(dtype)

    tq = _pick_tile(hw_pad, tq)
    tk = _pick_tile(hw_pad, tk)
    # v7x has 2 TensorCores: make sure the parallel grid axes expose >= 2 units.
    if B * (hw_pad // tq) < 2 and (hw_pad // 128) >= 2:
        tq = _pick_tile(hw_pad, hw_pad // 2)
    grid = (B, hw_pad // tq, hw_pad // tk)

    # Explicit VMEM budget (double-buffered in/out blocks + scratch + temporaries).
    itemsize = jnp.dtype(dtype).itemsize
    block_bytes = (ci_pad * tq + tk * ci_pad + C * tk + C * tq) * itemsize
    scratch_bytes = (C * tq + 2 * tq) * 4
    temp_bytes = 2 * tk * tq * 4                       # s and p f32 temporaries
    budget = 2 * block_bytes + scratch_bytes + temp_bytes
    if vmem_limit_bytes is None:
        vmem_limit_bytes = min(max(32 << 20, int(budget * 1.5)), 64 << 20)

    nq = hw_pad // tq
    cost = pl.CostEstimate(
        flops=2 * B * hw_pad * hw_pad * (ci_pad + C),
        transcendentals=B * hw_pad * hw_pad,
        bytes_accessed=int(B * itemsize * (ci_pad * hw_pad
                                           + nq * (hw_pad * ci_pad + C * hw_pad)
                                           + C * hw_pad)),
    )

    kernel = functools.partial(_nonlocal_flash_kernel, hw=HW, tk=tk,
                               mask_keys=(hw_pad != HW))

    y_flat = pl.pallas_call(
        kernel,
        out_shape=jax.ShapeDtypeStruct((B, C, hw_pad), dtype),
        grid_spec=pltpu.PrefetchScalarGridSpec(
            num_scalar_prefetch=0,
            grid=grid,
            in_specs=[
                pl.BlockSpec((1, ci_pad, tq), lambda b, qi, ki: (b, 0, qi)),  # theta (q tile)
                pl.BlockSpec((1, tk, ci_pad), lambda b, qi, ki: (b, ki, 0)),  # phi^T (k tile)
                pl.BlockSpec((1, C, tk),      lambda b, qi, ki: (b, 0, ki)),  # g = x (k tile)
            ],
            out_specs=pl.BlockSpec((1, C, tq), lambda b, qi, ki: (b, 0, qi)),
            scratch_shapes=[
                pltpu.VMEM((1, tq), jnp.float32),   # running max m
                pltpu.VMEM((1, tq), jnp.float32),   # running denominator l
                pltpu.VMEM((C, tq), jnp.float32),   # output accumulator
            ],
        ),
        compiler_params=pltpu.CompilerParams(
            dimension_semantics=("parallel", "parallel", "arbitrary"),
            vmem_limit_bytes=vmem_limit_bytes),
        cost_estimate=cost,
    )(theta, phi_t, x_flat)

    # Drop padded query columns; pure reshape back to NCHW.
    return y_flat[:, :, :HW].reshape(B, C, H, W)


def nonlocal_filter_ref(x, w_theta, b_theta, w_phi, b_phi):
    """Pure-JAX reference mirroring the PyTorch forward (embed=True, softmax=True)."""
    B, C, H, W = x.shape
    Ci = w_theta.shape[0]
    hp = lax.Precision.HIGHEST
    xf = x.astype(jnp.float32)
    theta = jnp.einsum('bchw,ic->bihw', xf, w_theta, precision=hp) + b_theta[None, :, None, None]
    phi = jnp.einsum('bchw,ic->bihw', xf, w_phi, precision=hp) + b_phi[None, :, None, None]
    theta = theta.reshape(B, Ci, H * W).transpose(0, 2, 1)   # (B, HW, Ci)
    phi = phi.reshape(B, Ci, H * W)                          # (B, Ci, HW)
    g = xf.reshape(B, C, H * W).transpose(0, 2, 1)           # (B, HW, C)
    f = jnp.matmul(theta, phi, precision=hp) / math.sqrt(Ci)
    f = jax.nn.softmax(f, axis=-1)
    y = jnp.matmul(f, g, precision=hp)                       # (B, HW, C)
    return y.transpose(0, 2, 1).reshape(B, C, H, W).astype(x.dtype)


if __name__ == "__main__":
    key = jax.random.PRNGKey(0)
    B, C, H, W = 2, 4, 16, 16
    Ci = max(C // 2, 1)

    kx, kwt, kbt, kwp, kbp, kx2 = jax.random.split(key, 6)
    x = jax.random.normal(kx, (B, C, H, W), dtype=jnp.float32)
    # Deterministic synthetic parameters (Conv2d 1x1 weights ~ N(0, 0.01), small biases)
    w_theta = 0.01 * jax.random.normal(kwt, (Ci, C), dtype=jnp.float32)
    b_theta = 0.01 * jax.random.normal(kbt, (Ci,), dtype=jnp.float32)
    w_phi = 0.01 * jax.random.normal(kwp, (Ci, C), dtype=jnp.float32)
    b_phi = 0.01 * jax.random.normal(kbp, (Ci,), dtype=jnp.float32)

    y_ref = nonlocal_filter_ref(x, w_theta, b_theta, w_phi, b_phi)

    # Single-tile path: whole (padded) HW in one key block.
    y_full = jax.block_until_ready(
        nonlocal_filter(x, w_theta, b_theta, w_phi, b_phi))
    assert y_full.shape == (B, C, H, W)
    assert jnp.allclose(y_full, y_ref, atol=2e-4, rtol=2e-4), "full-tile mismatch vs reference"

    # Multi-tile path: exercises the online-softmax accumulation across k tiles.
    y_tiled = jax.block_until_ready(
        nonlocal_filter(x, w_theta, b_theta, w_phi, b_phi, tq=128, tk=128))
    assert jnp.allclose(y_tiled, y_ref, atol=2e-4, rtol=2e-4), "tiled mismatch vs reference"

    # Non-128-multiple spatial extent: exercises HW padding + key masking.
    x2 = jax.random.normal(kx2, (B, C, 13, 13), dtype=jnp.float32)
    y2_ref = nonlocal_filter_ref(x2, w_theta, b_theta, w_phi, b_phi)
    y2 = jax.block_until_ready(
        nonlocal_filter(x2, w_theta, b_theta, w_phi, b_phi, tq=128, tk=128))
    assert y2.shape == (B, C, 13, 13)
    assert jnp.allclose(y2, y2_ref, atol=2e-4, rtol=2e-4), "padded/masked mismatch vs reference"

    print("KERNEL_OK")
</pallas_src>

<mosaic_0001>
module attributes {stable_mosaic.version = 11 : i64} {
  func.func @_nonlocal_flash_kernel(%arg0: i32, %arg1: i32, %arg2: i32, %arg3: memref<1x8x256xf32, #tpu.memory_space<vmem>>, %arg4: memref<1x256x8xf32, #tpu.memory_space<vmem>>, %arg5: memref<1x4x256xf32, #tpu.memory_space<vmem>>, %arg6: memref<1x4x256xf32, #tpu.memory_space<vmem>>, %arg7: memref<1x256xf32, #tpu.memory_space<vmem>>, %arg8: memref<1x256xf32, #tpu.memory_space<vmem>>, %arg9: memref<4x256xf32, #tpu.memory_space<vmem>>) attributes {dimension_semantics = [#tpu.dimension_semantics<parallel>, #tpu.dimension_semantics<parallel>, #tpu.dimension_semantics<arbitrary>], iteration_bounds = array<i64: 2, 1, 1>, scalar_prefetch = 0 : i64, scratch_operands = 3 : i64, tpu.core_type = #tpu.core_type<tc>, window_params = [{transform_indices = @transform_0, window_bounds = array<i64: 1, 8, 256>}, {transform_indices = @transform_1, window_bounds = array<i64: 1, 256, 8>}, {transform_indices = @transform_2, window_bounds = array<i64: 1, 4, 256>}, {transform_indices = @transform_3, window_bounds = array<i64: 1, 4, 256>}]} {
    %c0_i32 = arith.constant 0 : i32
    %0 = arith.cmpi eq, %arg2, %c0_i32 : i32
    %1 = arith.extui %0 : i1 to i32
    %c0_i32_0 = arith.constant 0 : i32
    %2 = arith.cmpi ne, %1, %c0_i32_0 : i32
    scf.if %2 {
      %cst_26 = arith.constant 0xFF800000 : f32
      %35 = vector.broadcast %cst_26 : f32 to vector<1x256xf32>
      %c0_27 = arith.constant 0 : index
      %c0_28 = arith.constant 0 : index
      %36 = vector.load %arg7[%c0_27, %c0_28] : memref<1x256xf32, #tpu.memory_space<vmem>>, vector<1x256xf32>
      tpu.vector_store %arg7[%c0_27, %c0_28], %35 {strides = array<i32>} : memref<1x256xf32, #tpu.memory_space<vmem>>, vector<1x256xf32>,
      %cst_29 = arith.constant 0.000000e+00 : f32
      %37 = vector.broadcast %cst_29 : f32 to vector<1x256xf32>
      %c0_30 = arith.constant 0 : index
      %c0_31 = arith.constant 0 : index
      %38 = vector.load %arg8[%c0_30, %c0_31] : memref<1x256xf32, #tpu.memory_space<vmem>>, vector<1x256xf32>
      tpu.vector_store %arg8[%c0_30, %c0_31], %37 {strides = array<i32>} : memref<1x256xf32, #tpu.memory_space<vmem>>, vector<1x256xf32>,
      %cst_32 = arith.constant 0.000000e+00 : f32
      %39 = vector.broadcast %cst_32 : f32 to vector<4x256xf32>
      %c0_33 = arith.constant 0 : index
      %c0_34 = arith.constant 0 : index
      %40 = vector.load %arg9[%c0_33, %c0_34] : memref<4x256xf32, #tpu.memory_space<vmem>>, vector<4x256xf32>
      tpu.vector_store %arg9[%c0_33, %c0_34], %39 {strides = array<i32>} : memref<4x256xf32, #tpu.memory_space<vmem>>, vector<4x256xf32>,
    } else {
    }
    %c0 = arith.constant 0 : index
    %c0_1 = arith.constant 0 : index
    %c0_2 = arith.constant 0 : index
    %3 = vector.load %arg4[%c0, %c0_1, %c0_2] : memref<1x256x8xf32, #tpu.memory_space<vmem>>, vector<1x256x8xf32>
    %4 = vector.shape_cast %3 : vector<1x256x8xf32> to vector<256x8xf32>
    %c0_3 = arith.constant 0 : index
    %c0_4 = arith.constant 0 : index
    %c0_5 = arith.constant 0 : index
    %5 = vector.load %arg3[%c0_3, %c0_4, %c0_5] : memref<1x8x256xf32, #tpu.memory_space<vmem>>, vector<1x8x256xf32>
    %6 = vector.shape_cast %5 : vector<1x8x256xf32> to vector<8x256xf32>
    %c0_6 = arith.constant 0 : index
    %c0_7 = arith.constant 0 : index
    %c0_8 = arith.constant 0 : index
    %7 = vector.load %arg5[%c0_6, %c0_7, %c0_8] : memref<1x4x256xf32, #tpu.memory_space<vmem>>, vector<1x4x256xf32>
    %8 = vector.shape_cast %7 : vector<1x4x256xf32> to vector<4x256xf32>
    %cst = arith.constant dense<0.000000e+00> : vector<256x256xf32>
    %9 = tpu.matmul %4, %6, %cst {dimension_numbers = #tpu.dot_dimension_numbers<[1], [0], [0], [1], [0, 0, 1, 1], [], []>} : vector<256x8xf32>, vector<8x256xf32>, vector<256x256xf32> -> vector<256x256xf32>
    %c0_9 = arith.constant 0 : index
    %c0_10 = arith.constant 0 : index
    %10 = vector.load %arg7[%c0_9, %c0_10] : memref<1x256xf32, #tpu.memory_space<vmem>>, vector<1x256xf32>
    %cst_11 = arith.constant dense<0xFF800000> : vector<256xf32>
    %11 = vector.multi_reduction <maximumf>, %9, %cst_11 [0] : vector<256x256xf32> to vector<256xf32>
    %12 = vector.shape_cast %11 : vector<256xf32> to vector<1x256xf32>
    %13 = arith.maximumf %10, %12 : vector<1x256xf32>
    %14 = arith.subf %10, %13 : vector<1x256xf32>
    %15 = math.exp %14 : vector<1x256xf32>
    %16 = vector.broadcast %13 : vector<1x256xf32> to vector<256x256xf32>
    %17 = arith.subf %9, %16 : vector<256x256xf32>
    %18 = math.exp %17 : vector<256x256xf32>
    %c0_12 = arith.constant 0 : index
    %c0_13 = arith.constant 0 : index
    %19 = vector.load %arg8[%c0_12, %c0_13] : memref<1x256xf32, #tpu.memory_space<vmem>>, vector<1x256xf32>
    %20 = arith.mulf %15, %19 : vector<1x256xf32>
    %cst_14 = arith.constant dense<0.000000e+00> : vector<256xf32>
    %21 = vector.multi_reduction <add>, %18, %cst_14 [0] : vector<256x256xf32> to vector<256xf32>
    %22 = vector.shape_cast %21 : vector<256xf32> to vector<1x256xf32>
    %23 = arith.addf %20, %22 : vector<1x256xf32>
    %c0_15 = arith.constant 0 : index
    %c0_16 = arith.constant 0 : index
    %24 = vector.load %arg8[%c0_15, %c0_16] : memref<1x256xf32, #tpu.memory_space<vmem>>, vector<1x256xf32>
    tpu.vector_store %arg8[%c0_15, %c0_16], %23 {strides = array<i32>} : memref<1x256xf32, #tpu.memory_space<vmem>>, vector<1x256xf32>,
    %c0_17 = arith.constant 0 : index
    %c0_18 = arith.constant 0 : index
    %25 = vector.load %arg7[%c0_17, %c0_18] : memref<1x256xf32, #tpu.memory_space<vmem>>, vector<1x256xf32>
    tpu.vector_store %arg7[%c0_17, %c0_18], %13 {strides = array<i32>} : memref<1x256xf32, #tpu.memory_space<vmem>>, vector<1x256xf32>,
    %c0_19 = arith.constant 0 : index
    %c0_20 = arith.constant 0 : index
    %26 = vector.load %arg9[%c0_19, %c0_20] : memref<4x256xf32, #tpu.memory_space<vmem>>, vector<4x256xf32>
    %27 = vector.broadcast %15 : vector<1x256xf32> to vector<4x256xf32>
    %28 = arith.mulf %27, %26 : vector<4x256xf32>
    %cst_21 = arith.constant dense<0.000000e+00> : vector<4x256xf32>
    %29 = tpu.matmul %8, %18, %cst_21 {dimension_numbers = #tpu.dot_dimension_numbers<[1], [0], [0], [1], [0, 0, 1, 1], [], []>} : vector<4x256xf32>, vector<256x256xf32>, vector<4x256xf32> -> vector<4x256xf32>
    %30 = arith.addf %28, %29 : vector<4x256xf32>
    %c0_22 = arith.constant 0 : index
    %c0_23 = arith.constant 0 : index
    %31 = vector.load %arg9[%c0_22, %c0_23] : memref<4x256xf32, #tpu.memory_space<vmem>>, vector<4x256xf32>
    tpu.vector_store %arg9[%c0_22, %c0_23], %30 {strides = array<i32>} : memref<4x256xf32, #tpu.memory_space<vmem>>, vector<4x256xf32>,
    %c0_i32_24 = arith.constant 0 : i32
    %32 = arith.cmpi eq, %arg2, %c0_i32_24 : i32
    %33 = arith.extui %32 : i1 to i32
    %c0_i32_25 = arith.constant 0 : i32
    %34 = arith.cmpi ne, %33, %c0_i32_25 : i32
    scf.if %34 {
      %c0_26 = arith.constant 0 : index
      %c0_27 = arith.constant 0 : index
      %35 = vector.load %arg8[%c0_26, %c0_27] : memref<1x256xf32, #tpu.memory_space<vmem>>, vector<1x256xf32>
      %36 = tpu.reciprocal %35 : vector<1x256xf32> -> vector<1x256xf32>
      %c0_28 = arith.constant 0 : index
      %c0_29 = arith.constant 0 : index
      %37 = vector.load %arg9[%c0_28, %c0_29] : memref<4x256xf32, #tpu.memory_space<vmem>>, vector<4x256xf32>
      %38 = vector.broadcast %36 : vector<1x256xf32> to vector<4x256xf32>
      %39 = arith.mulf %37, %38 : vector<4x256xf32>
      %c0_30 = arith.constant 0 : index
      %c0_31 = arith.constant 0 : index
      %c0_32 = arith.constant 0 : index
      %40 = vector.load %arg6[%c0_30, %c0_31, %c0_32] : memref<1x4x256xf32, #tpu.memory_space<vmem>>, vector<1x4x256xf32>
      %41 = vector.shape_cast %40 : vector<1x4x256xf32> to vector<4x256xf32>
      %42 = vector.shape_cast %39 : vector<4x256xf32> to vector<1x4x256xf32>
      tpu.vector_store %arg6[%c0_30, %c0_31, %c0_32], %42 {strides = array<i32>} : memref<1x4x256xf32, #tpu.memory_space<vmem>>, vector<1x4x256xf32>,
    } else {
    }
    return
  }
  func.func @transform_0(%arg0: i32, %arg1: i32, %arg2: i32) -> (i32, i32, i32) {
    %c0_i32 = arith.constant 0 : i32
    %c0_i32_0 = arith.constant 0 : i32
    return %arg0, %c0_i32, %arg1 : i32, i32, i32
  }
  func.func @transform_1(%arg0: i32, %arg1: i32, %arg2: i32) -> (i32, i32, i32) {
    %c0_i32 = arith.constant 0 : i32
    %c0_i32_0 = arith.constant 0 : i32
    return %arg0, %arg2, %c0_i32 : i32, i32, i32
  }
  func.func @transform_2(%arg0: i32, %arg1: i32, %arg2: i32) -> (i32, i32, i32) {
    %c0_i32 = arith.constant 0 : i32
    %c0_i32_0 = arith.constant 0 : i32
    return %arg0, %c0_i32, %arg2 : i32, i32, i32
  }
  func.func @transform_3(%arg0: i32, %arg1: i32, %arg2: i32) -> (i32, i32, i32) {
    %c0_i32 = arith.constant 0 : i32
    %c0_i32_0 = arith.constant 0 : i32
    return %arg0, %c0_i32, %arg1 : i32, i32, i32
  }
}

</mosaic_0001>

<llo_original>
// kernel: tpu_custom_call.1
$region0: #{tpu_custom_call.1}
  #allocation0 [shape = 'u32[]', space=smem, size = 0x4, offset = 0x4, fixed_abs, tag = 'smem constant byte address 0x4 - core index']
  #allocation1 [shape = 'u32[144,128]{1,0:T(1,128)}', space=vmem, size = 0x12000, scoped, tag = 'internal scratch']
  #allocation2 [shape = 'f32[1,256]{1,0:T(1,128)}', space=vmem, size = 0x400, scoped, tag = 'scratch operand']
  #allocation3 [shape = 'f32[1,256]{1,0:T(1,128)}', space=vmem, size = 0x400, scoped, tag = 'scratch operand']
  #allocation4 [shape = 'f32[4,256]{1,0:T(4,128)}', space=vmem, size = 0x1000, scoped, tag = 'scratch operand']
  %s0 = inlined_call_operand.vmem [shape: f32[2,8,256], index: 0, kind: input, shape index: {}]
  %s1 = inlined_call_operand.vmem [shape: f32[2,256,8], index: 1, kind: input, shape index: {}]
  %s2 = inlined_call_operand.vmem [shape: f32[2,4,256], index: 2, kind: input, shape index: {}]
  %s3 = inlined_call_operand.hbm [shape: f32[2,4,256], index: 3, kind: output, shape index: {}]
  %s4 = sld [smem:[#allocation0]]
  $region53: #{tpu_custom_call.1} parent=0
    _
  %s6 = ssub.s32 1, %s4
  %s7 = scalar_select 0, %s6, %s4
  $region1: #{tpu_custom_call.1} parent=0
    #allocation5 [shape = 'u8[8192]{0}', space=vmem, size = 0x2000, scoped, tag = 'output window, operand 0']
    #allocation6 [shape = 's32[2]{0}', space=sflag, size = 0x8, scoped, tag = 'scoped memory for tpu_custom_call.1']
    %8 = vsyncpa [#allocation6], 0
    %s9 = scalar_lea.sflag [#allocation6], 1
    %10 = vsyncpa %s9, 0
    loop: start=0, step=1, limit=4
    $region2: #{tpu_custom_call.1} parent=1 // loop_pre_header
      _
    $region3: #{tpu_custom_call.1} parent=1 // loop_header
      %s12 = sphi 0, %s16
      %p13 = scmp.ge.s32.totalorder %s12, 4
      %s19 = sphi 0, %s38
      %s20 = sphi 0, %s34
      %s21 = sphi 0, %s30
      %s22 = sphi 0, %s19
      %s23 = sphi 0, %s20
      %s24 = sphi 0, %s21
      %s25 = sphi 0, %s22
      %s26 = sphi 0, %s23
      %s27 = sphi 0, %s24
      %s43 = sphi 0, %s45
      %s46 = sphi 0, %s43
      %s47 = sphi 0, %s46
      %s63 = sphi 0, %s47
      %s71 = sphi 0, %s73
      %s74 = sphi 0, %s71
      %s75 = sphi 0, %s74
      %s91 = sphi 0, %s75
      %s99 = sphi 0, %s101
      %s102 = sphi 0, %s99
      %s103 = sphi 0, %s102
      %s119 = sphi 0, %s103
      %s127 = sphi 0, %s129
      %s130 = sphi 0, %s127
      %s131 = sphi 0, %s130
      %s147 = sphi 0, %s131
    $region4: #{tpu_custom_call.1} parent=1 // loop_header_branch
      %15 = sbr.rel (%p13) target = $region8
    $region5: #{tpu_custom_call.1} parent=1 // loop_body
      %s17 = ssub.s32 %s12, 1
      %s18 = ssub.s32 %s12, 2
      %s28 = sadd.s32 1, %s21
      %p29 = scmp.ge.s32.totalorder %s28, 1
      %s30 = scalar_select %p29, 0, %s28
      %s31 = sadd.s32 1, %s20
      %s32 = scalar_select %p29, %s31, %s20
      %p33 = scmp.ge.s32.totalorder %s32, 1
      %s34 = scalar_select %p33, 0, %s32
      %s35 = sadd.s32 1, %s19
      %s36 = scalar_select %p33, %s35, %s19
      %p37 = scmp.ge.s32.totalorder %s36, 2
      %s38 = scalar_select %p37, 0, %s36
      %s39 = ssub.s32 %s19, %s38
      %s40 = ssub.s32 %s20, %s34
      %s41 = sor.u32 %s39, %s40
      %p42 = scmp.eq.s32.totalorder %s41, 0
      %s44 = sadd.s32 %s43, 1
      %s45 = scalar_select %p42, %s43, %s44
      %p48 = pneg %p42
      %p49 = scmp.eq.s32.totalorder %s12, 1
      %p50 = por %p48, %p49
      %p51 = scmp.ne.s32.totalorder %s43, %s46
      %p52 = scmp.eq.s32.totalorder %s12, 0
      %p53 = por %p51, %p52
      %p54 = scmp.ne.s32.totalorder %s43, %s46
      %p55 = scmp.eq.s32.totalorder %s17, 1
      %p56 = por %p54, %p55
      %p57 = scmp.ne.s32.totalorder %s46, %s47
      %p58 = scmp.eq.s32.totalorder %s17, 0
      %p59 = por %p57, %p58
      %p60 = scmp.ne.s32.totalorder %s46, %s47
      %p61 = scmp.eq.s32.totalorder %s18, 1
      %p62 = por %p60, %p61
      %p64 = scmp.ne.s32.totalorder %s47, %s63
      %p65 = scmp.eq.s32.totalorder %s18, 0
      %p66 = por %p64, %p65
      %s67 = ssub.s32 %s19, %s38
      %s68 = ssub.s32 %s21, %s30
      %s69 = sor.u32 %s67, %s68
      %p70 = scmp.eq.s32.totalorder %s69, 0
      %s72 = sadd.s32 %s71, 1
      %s73 = scalar_select %p70, %s71, %s72
      %p76 = pneg %p70
      %p77 = scmp.eq.s32.totalorder %s12, 1
      %p78 = por %p76, %p77
      %p79 = scmp.ne.s32.totalorder %s71, %s74
      %p80 = scmp.eq.s32.totalorder %s12, 0
      %p81 = por %p79, %p80
      %p82 = scmp.ne.s32.totalorder %s71, %s74
      %p83 = scmp.eq.s32.totalorder %s17, 1
      %p84 = por %p82, %p83
      %p85 = scmp.ne.s32.totalorder %s74, %s75
      %p86 = scmp.eq.s32.totalorder %s17, 0
      %p87 = por %p85, %p86
      %p88 = scmp.ne.s32.totalorder %s74, %s75
      %p89 = scmp.eq.s32.totalorder %s18, 1
      %p90 = por %p88, %p89
      %p92 = scmp.ne.s32.totalorder %s75, %s91
      %p93 = scmp.eq.s32.totalorder %s18, 0
      %p94 = por %p92, %p93
      %s95 = ssub.s32 %s19, %s38
      %s96 = ssub.s32 %s21, %s30
      %s97 = sor.u32 %s95, %s96
      %p98 = scmp.eq.s32.totalorder %s97, 0
      %s100 = sadd.s32 %s99, 1
      %s101 = scalar_select %p98, %s99, %s100
      %p104 = pneg %p98
      %p105 = scmp.eq.s32.totalorder %s12, 1
      %p106 = por %p104, %p105
      %p107 = scmp.ne.s32.totalorder %s99, %s102
      %p108 = scmp.eq.s32.totalorder %s12, 0
      %p109 = por %p107, %p108
      %p110 = scmp.ne.s32.totalorder %s99, %s102
      %p111 = scmp.eq.s32.totalorder %s17, 1
      %p112 = por %p110, %p111
      %p113 = scmp.ne.s32.totalorder %s102, %s103
      %p114 = scmp.eq.s32.totalorder %s17, 0
      %p115 = por %p113, %p114
      %p116 = scmp.ne.s32.totalorder %s102, %s103
      %p117 = scmp.eq.s32.totalorder %s18, 1
      %p118 = por %p116, %p117
      %p120 = scmp.ne.s32.totalorder %s103, %s119
      %p121 = scmp.eq.s32.totalorder %s18, 0
      %p122 = por %p120, %p121
      %s123 = ssub.s32 %s19, %s38
      %s124 = ssub.s32 %s20, %s34
      %s125 = sor.u32 %s123, %s124
      %p126 = scmp.eq.s32.totalorder %s125, 0
      %s128 = sadd.s32 %s127, 1
      %s129 = scalar_select %p126, %s127, %s128
      %p132 = pneg %p126
      %p133 = scmp.eq.s32.totalorder %s12, 1
      %p134 = por %p132, %p133
      %p135 = scmp.ne.s32.totalorder %s127, %s130
      %p136 = scmp.eq.s32.totalorder %s12, 0
      %p137 = por %p135, %p136
      %p138 = scmp.ne.s32.totalorder %s127, %s130
      %p139 = scmp.eq.s32.totalorder %s17, 1
      %p140 = por %p138, %p139
      %p141 = scmp.ne.s32.totalorder %s130, %s131
      %p142 = scmp.eq.s32.totalorder %s17, 0
      %p143 = por %p141, %p142
      %p144 = scmp.ne.s32.totalorder %s130, %s131
      %p145 = scmp.eq.s32.totalorder %s18, 1
      %p146 = por %p144, %p145
      %p148 = scmp.ne.s32.totalorder %s131, %s147
      %p149 = scmp.eq.s32.totalorder %s18, 0
      %p150 = por %p148, %p149
      %p151 = scmp.le.s32.totalorder 1, %s12
      %p152 = scmp.lt.s32.totalorder %s12, 3
      %p153 = pnand %p151, %p152
      %p154 = pneg %p153
      // Predicated region
      $region9: #{tpu_custom_call.1} parent=5 // pred_check
        _
      $region10: #{tpu_custom_call.1} parent=5 // pred_check_branch
        %156 = sbr.rel (%p153) target = $region12
      $region11: #{tpu_custom_call.1} parent=5 // pred_region
        %s157 = ssub.s32 %s12, 1
      $region12: #{tpu_custom_call.1} parent=5 // pred_fallthru
        _
      %p158 = scmp.lt.s32.totalorder %s12, 2
      // Predicated region
      $region13: #{tpu_custom_call.1} parent=5 // pred_check
        %p159 = pneg %p158
      $region14: #{tpu_custom_call.1} parent=5 // pred_check_branch
        %161 = sbr.rel (%p159) target = $region16
      $region15: #{tpu_custom_call.1} parent=5 // pred_region
        // Predicated region
        $region17: #{tpu_custom_call.1} parent=15 // pred_check
          %p162 = pneg %p53
        $region18: #{tpu_custom_call.1} parent=15 // pred_check_branch
          %164 = sbr.rel (%p162) target = $region20
        $region19: #{tpu_custom_call.1} parent=15 // pred_region
          %s165 = smul.u32 2, %s20
          %p166 = scmp.lt.s32.totalorder %s19, 1
          %s167 = scalar_select %p166, %s19, 1
          %p168 = scmp.lt.s32.totalorder %s165, 1
          %s169 = scalar_select %p168, %s165, 1
          %s170 = smul.addr %s167, 2
          %s171 = sadd.s32 %s169, %s170
          %s172 = smul.addr %s171, 8
          %s173 = scalar_lea.vmem %s0, %s172
          %s174 = smul.u32 2, %s20
        $region20: #{tpu_custom_call.1} parent=15 // pred_fallthru
          _
        // Predicated region
        $region21: #{tpu_custom_call.1} parent=15 // pred_check
          %p175 = pneg %p81
        $region22: #{tpu_custom_call.1} parent=15 // pred_check_branch
          %177 = sbr.rel (%p175) target = $region24
        $region23: #{tpu_custom_call.1} parent=15 // pred_region
          %s178 = smul.u32 32, %s21
          %p179 = scmp.lt.s32.totalorder %s19, 1
          %s180 = scalar_select %p179, %s19, 1
          %p181 = scmp.lt.s32.totalorder %s178, 31
          %s182 = scalar_select %p181, %s178, 31
          %s183 = smul.addr %s180, 32
          %s184 = sadd.s32 %s182, %s183
          %s185 = smul.addr %s184, 8
          %s186 = scalar_lea.vmem %s1, %s185
          %s187 = smul.u32 32, %s21
        $region24: #{tpu_custom_call.1} parent=15 // pred_fallthru
          _
        // Predicated region
        $region25: #{tpu_custom_call.1} parent=15 // pred_check
          %p188 = pneg %p109
        $region26: #{tpu_custom_call.1} parent=15 // pred_check_branch
          %190 = sbr.rel (%p188) target = $region28
        $region27: #{tpu_custom_call.1} parent=15 // pred_region
          %s191 = smul.u32 2, %s21
          %p192 = scmp.lt.s32.totalorder %s19, 1
          %s193 = scalar_select %p192, %s19, 1
          %p194 = scmp.lt.s32.totalorder %s191, 1
          %s195 = scalar_select %p194, %s191, 1
          %s196 = smul.addr %s193, 2
          %s197 = sadd.s32 %s195, %s196
          %s198 = smul.addr %s197, 4
          %s199 = scalar_lea.vmem %s2, %s198
          %s200 = smul.u32 2, %s21
        $region28: #{tpu_custom_call.1} parent=15 // pred_fallthru
          _
      $region16: #{tpu_custom_call.1} parent=5 // pred_fallthru
        _
      %p201 = scmp.le.s32.totalorder 1, %s12
      %p202 = scmp.lt.s32.totalorder %s12, 3
      %p203 = pnand %p201, %p202
      %p204 = pneg %p203
      // Predicated region
      $region29: #{tpu_custom_call.1} parent=5 // pred_check
        _
      $region30: #{tpu_custom_call.1} parent=5 // pred_check_branch
        %206 = sbr.rel (%p203) target = $region32
      $region31: #{tpu_custom_call.1} parent=5 // pred_region
        %s207 = ssub.s32 %s12, 1
        %s208 = smul.u32 2, %s23
        %p209 = scmp.lt.s32.totalorder %s22, 1
        %s210 = scalar_select %p209, %s22, 1
        %p211 = scmp.lt.s32.totalorder %s208, 1
        %s212 = scalar_select %p211, %s208, 1
        %s213 = smul.addr %s210, 2
        %s214 = sadd.s32 %s212, %s213
        %s215 = smul.addr %s214, 8
        %s216 = scalar_lea.vmem %s0, %s215
        %p217 = pneg %p59
        %p218 = pneg %p56
        %s219 = smul.u32 32, %s24
        %p220 = scmp.lt.s32.totalorder %s22, 1
        %s221 = scalar_select %p220, %s22, 1
        %p222 = scmp.lt.s32.totalorder %s219, 31
        %s223 = scalar_select %p222, %s219, 31
        %s224 = smul.addr %s221, 32
        %s225 = sadd.s32 %s223, %s224
        %s226 = smul.addr %s225, 8
        %s227 = scalar_lea.vmem %s1, %s226
        %p228 = pneg %p87
        %p229 = pneg %p84
        %s230 = smul.u32 2, %s24
        %p231 = scmp.lt.s32.totalorder %s22, 1
        %s232 = scalar_select %p231, %s22, 1
        %p233 = scmp.lt.s32.totalorder %s230, 1
        %s234 = scalar_select %p233, %s230, 1
        %s235 = smul.addr %s232, 2
        %s236 = sadd.s32 %s234, %s235
        %s237 = smul.addr %s236, 4
        %s238 = scalar_lea.vmem %s2, %s237
        %p239 = pneg %p115
        %p240 = pneg %p112
        %p241 = pneg %p143
        %p242 = pneg %p140
        %s243 = sand.u32 %s130, 1
        %s244 = scalar_lea.sflag [#allocation6], %s243
        %s245 = sand.u32 %s130, 1
        %s246 = smul.addr %s245, 8
        %s247 = scalar_lea.vmem [#allocation5], %s246
        %s248 = smul.u32 2, %s23
        %p249 = scmp.lt.s32.totalorder %s22, 1
        %s250 = scalar_select %p249, %s22, 1
        %p251 = scmp.lt.s32.totalorder %s248, 1
        %s252 = scalar_select %p251, %s248, 1
        %s253 = smul.addr %s250, 2
        %s254 = sadd.s32 %s252, %s253
        %s255 = smul.addr %s254, 8
        %s256 = scalar_lea.vmem %s0, %s255
        %s257 = smul.u32 2, %s23
        %s258 = smul.u32 32, %s24
        %p259 = scmp.lt.s32.totalorder %s22, 1
        %s260 = scalar_select %p259, %s22, 1
        %p261 = scmp.lt.s32.totalorder %s258, 31
        %s262 = scalar_select %p261, %s258, 31
        %s263 = smul.addr %s260, 32
        %s264 = sadd.s32 %s262, %s263
        %s265 = smul.addr %s264, 8
        %s266 = scalar_lea.vmem %s1, %s265
        %s267 = smul.u32 32, %s24
        %s268 = smul.u32 2, %s24
        %p269 = scmp.lt.s32.totalorder %s22, 1
        %s270 = scalar_select %p269, %s22, 1
        %p271 = scmp.lt.s32.totalorder %s268, 1
        %s272 = scalar_select %p271, %s268, 1
        %s273 = smul.addr %s270, 2
        %s274 = sadd.s32 %s272, %s273
        %s275 = smul.addr %s274, 4
        %s276 = scalar_lea.vmem %s2, %s275
        %s277 = smul.u32 2, %s24
        %s278 = smul.u32 2, %s23
        %p279 = scmp.eq.s32.totalorder %s24, 0
        // Predicated region
        $region33: #{tpu_custom_call.1} parent=31 // pred_check
          %p280 = pneg %p279
        $region34: #{tpu_custom_call.1} parent=31 // pred_check_branch
          %282 = sbr.rel (%p280) target = $region36
        $region35: #{tpu_custom_call.1} parent=31 // pred_region
          %v283 = vlaneseq
          %vm284 = vcmp.ge.s32.totalorder %v283, 0
          %vm285 = vcmp.lt.s32.totalorder %v283, 256
          %vm286 = vmand %vm284, %vm285
          %287 = vst.msk [vmem:[#allocation2] sm:$0x3] %vm286, -inf
          %288 = vst.msk [vmem:[#allocation3] sm:$0x3] %vm286, 0.0
          %289 = vst [vmem:[#allocation4] sm:$0xff] 0.0
        $region36: #{tpu_custom_call.1} parent=31 // pred_fallthru
          _
        %v290 = vld [vmem:[%s266] sm:$0xff]
        %v291 = vld [vmem:[%s266 + $0x8] sm:$0xff]
        %v292 = vld [vmem:[%s266 + $0x10] sm:$0xff]
        %v293 = vld [vmem:[%s266 + $0x18] sm:$0xff]
        %v294 = vld [vmem:[%s266 + $0x20] sm:$0xff]
        %v295 = vld [vmem:[%s266 + $0x28] sm:$0xff]
        %v296 = vld [vmem:[%s266 + $0x30] sm:$0xff]
        %v297 = vld [vmem:[%s266 + $0x38] sm:$0xff]
        %v298 = vld [vmem:[%s266 + $0x40] sm:$0xff]
        %v299 = vld [vmem:[%s266 + $0x48] sm:$0xff]
        %v300 = vld [vmem:[%s266 + $0x50] sm:$0xff]
        %v301 = vld [vmem:[%s266 + $0x58] sm:$0xff]
        %v302 = vld [vmem:[%s266 + $0x60] sm:$0xff]
        %v303 = vld [vmem:[%s266 + $0x68] sm:$0xff]
        %v304 = vld [vmem:[%s266 + $0x70] sm:$0xff]
        %v305 = vld [vmem:[%s266 + $0x78] sm:$0xff]
        %v306 = vld [vmem:[%s266 + $0x80] sm:$0xff]
        %v307 = vld [vmem:[%s266 + $0x88] sm:$0xff]
        %v308 = vld [vmem:[%s266 + $0x90] sm:$0xff]
        %v309 = vld [vmem:[%s266 + $0x98] sm:$0xff]
        %v310 = vld [vmem:[%s266 + $0xa0] sm:$0xff]
        %v311 = vld [vmem:[%s266 + $0xa8] sm:$0xff]
        %v312 = vld [vmem:[%s266 + $0xb0] sm:$0xff]
        %v313 = vld [vmem:[%s266 + $0xb8] sm:$0xff]
        %v314 = vld [vmem:[%s266 + $0xc0] sm:$0xff]
        %v315 = vld [vmem:[%s266 + $0xc8] sm:$0xff]
        %v316 = vld [vmem:[%s266 + $0xd0] sm:$0xff]
        %v317 = vld [vmem:[%s266 + $0xd8] sm:$0xff]
        %v318 = vld [vmem:[%s266 + $0xe0] sm:$0xff]
        %v319 = vld [vmem:[%s266 + $0xe8] sm:$0xff]
        %v320 = vld [vmem:[%s266 + $0xf0] sm:$0xff]
        %v321 = vld [vmem:[%s266 + $0xf8] sm:$0xff]
        %v322 = vld [vmem:[%s256] sm:$0xff]
        %v323 = vld [vmem:[%s256 + $0x8] sm:$0xff]
        %v324 = vld [vmem:[%s276] sm:$0xff]
        %vm325 = vcmask 64512
        %v327 = vsel %vm325, %v290, 0
        %v330 = vsel %vm325, %v291, 0
        %v333 = vsel %vm325, %v292, 0
        %v336 = vsel %vm325, %v293, 0
        %v339 = vsel %vm325, %v294, 0
        %v342 = vsel %vm325, %v295, 0
        %v345 = vsel %vm325, %v296, 0
        %v348 = vsel %vm325, %v297, 0
        %v351 = vsel %vm325, %v298, 0
        %v354 = vsel %vm325, %v299, 0
        %v357 = vsel %vm325, %v300, 0
        %v360 = vsel %vm325, %v301, 0
        %v363 = vsel %vm325, %v302, 0
        %v366 = vsel %vm325, %v303, 0
        %v369 = vsel %vm325, %v304, 0
        %v372 = vsel %vm325, %v305, 0
        %v375 = vsel %vm325, %v306, 0
        %v378 = vsel %vm325, %v307, 0
        %v381 = vsel %vm325, %v308, 0
        %v384 = vsel %vm325, %v309, 0
        %v387 = vsel %vm325, %v310, 0
        %v390 = vsel %vm325, %v311, 0
        %v393 = vsel %vm325, %v312, 0
        %v396 = vsel %vm325, %v313, 0
        %v399 = vsel %vm325, %v314, 0
        %v402 = vsel %vm325, %v315, 0
        %v405 = vsel %vm325, %v316, 0
        %v408 = vsel %vm325, %v317, 0
        %v411 = vsel %vm325, %v318, 0
        %v414 = vsel %vm325, %v319, 0
        %v417 = vsel %vm325, %v320, 0
        %v420 = vsel %vm325, %v321, 0
        %422 = vmatprep.subr.mxu0 %v323
        %423 = vmatpush1.msra.mxu0 %v322
        %424 = vmatprep.subr.mxu0 0.0
        %425 = vmatpush1.msra.mxu0 0.0
        %426 = vmatprep.subr.mxu0 0.0
        %427 = vmatpush1.msra.mxu0 0.0
        %428 = vmatprep.subr.mxu0 0.0
        %429 = vmatpush1.msra.mxu0 0.0
        %430 = vmatprep.subr.mxu0 0.0
        %431 = vmatpush1.msra.mxu0 0.0
        %432 = vmatprep.subr.mxu0 0.0
        %433 = vmatpush1.msra.mxu0 0.0
        %434 = vmatprep.subr.mxu0 0.0
        %435 = vmatpush1.msra.mxu0 0.0
        %436 = vmatprep.subr.mxu0 0.0
        %437 = vmatpush1.msra.mxu0 0.0
        %438 = vmatprep.subr.mxu0 0.0
        %439 = vmatpush1.msra.mxu0 0.0
        %440 = vmatprep.subr.mxu0 0.0
        %441 = vmatpush1.msra.mxu0 0.0
        %442 = vmatprep.subr.mxu0 0.0
        %443 = vmatpush1.msra.mxu0 0.0
        %444 = vmatprep.subr.mxu0 0.0
        %445 = vmatpush1.msra.mxu0 0.0
        %446 = vmatprep.subr.mxu0 0.0
        %447 = vmatpush1.msra.mxu0 0.0
        %448 = vmatprep.subr.mxu0 0.0
        %449 = vmatpush1.msra.mxu0 0.0
        %450 = vmatprep.subr.mxu0 0.0
        %451 = vmatpush1.msra.mxu0 0.0
        %452 = vmatprep.subr.mxu0 0.0
        %453 = vmatpush1.msra.mxu0 0.0
        %454 = vmatprep.subr.mxu0 0.0
        %455 = vmatpush1.msra.mxu0 0.0
        %456 = vmatprep.subr.mxu0 0.0
        %457 = vmatpush1.msra.mxu0 0.0
        %458 = vmatprep.subr.mxu0 0.0
        %459 = vmatpush1.msra.mxu0 0.0
        %460 = vmatprep.subr.mxu0 0.0
        %461 = vmatpush1.msra.mxu0 0.0
        %462 = vmatprep.subr.mxu0 0.0
        %463 = vmatpush1.msra.mxu0 0.0
        %464 = vmatprep.subr.mxu0 0.0
        %465 = vmatpush1.msra.mxu0 0.0
        %466 = vmatprep.subr.mxu0 0.0
        %467 = vmatpush1.msra.mxu0 0.0
        %468 = vmatprep.subr.mxu0 0.0
        %469 = vmatpush1.msra.mxu0 0.0
        %470 = vmatprep.subr.mxu0 0.0
        %471 = vmatpush1.msra.mxu0 0.0
        %472 = vmatprep.subr.mxu0 0.0
        %473 = vmatpush1.msra.mxu0 0.0
        %474 = vmatprep.subr.mxu0 0.0
        %475 = vmatpush1.msra.mxu0 0.0
        %476 = vmatprep.subr.mxu0 0.0
        %477 = vmatpush1.msra.mxu0 0.0
        %478 = vmatprep.subr.mxu0 0.0
        %479 = vmatpush1.msra.mxu0 0.0
        %480 = vmatprep.subr.mxu0 0.0
        %481 = vmatpush1.msra.mxu0 0.0
        %482 = vmatprep.subr.mxu0 0.0
        %483 = vmatpush1.msra.mxu0 0.0
        %484 = vmatprep.subr.mxu0 0.0
        %485 = vmatpush1.msra.mxu0 0.0
        %486 = vmatprep.mubr.f32.mxu0 0.0
        %487 = vmatmul.mubr.f32.gmra.mrb[0].mxu0 %v327
        %v488 = vpop.f32.mrb[0].mxu0
        %v489 = vadd.f32 0.0, %v488
        %v490 = vpop.f32.mrb[0].mxu0
        %v491 = vadd.f32 0.0, %v490
        %492 = vmatprep.mubr.f32.mxu0 0.0
        %493 = vmatmul.mubr.f32.gmra.mrb[0].mxu0 %v330
        %v494 = vpop.f32.mrb[0].mxu0
        %v495 = vadd.f32 0.0, %v494
        %v496 = vpop.f32.mrb[0].mxu0
        %v497 = vadd.f32 0.0, %v496
        %498 = vmatprep.mubr.f32.mxu0 0.0
        %499 = vmatmul.mubr.f32.gmra.mrb[0].mxu0 %v333
        %v500 = vpop.f32.mrb[0].mxu0
        %v501 = vadd.f32 0.0, %v500
        %v502 = vpop.f32.mrb[0].mxu0
        %v503 = vadd.f32 0.0, %v502
        %504 = vmatprep.mubr.f32.mxu0 0.0
        %505 = vmatmul.mubr.f32.gmra.mrb[0].mxu0 %v336
        %v506 = vpop.f32.mrb[0].mxu0
        %v507 = vadd.f32 0.0, %v506
        %v508 = vpop.f32.mrb[0].mxu0
        %v509 = vadd.f32 0.0, %v508
        %510 = vmatprep.mubr.f32.mxu0 0.0
        %511 = vmatmul.mubr.f32.gmra.mrb[0].mxu0 %v339
        %v512 = vpop.f32.mrb[0].mxu0
        %v513 = vadd.f32 0.0, %v512
        %v514 = vpop.f32.mrb[0].mxu0
        %v515 = vadd.f32 0.0, %v514
        %516 = vmatprep.mubr.f32.mxu0 0.0
        %517 = vmatmul.mubr.f32.gmra.mrb[0].mxu0 %v342
        %v518 = vpop.f32.mrb[0].mxu0
        %v519 = vadd.f32 0.0, %v518
        %v520 = vpop.f32.mrb[0].mxu0
        %v521 = vadd.f32 0.0, %v520
        %522 = vmatprep.mubr.f32.mxu0 0.0
        %523 = vmatmul.mubr.f32.gmra.mrb[0].mxu0 %v345
        %v524 = vpop.f32.mrb[0].mxu0
        %v525 = vadd.f32 0.0, %v524
        %v526 = vpop.f32.mrb[0].mxu0
        %v527 = vadd.f32 0.0, %v526
        %528 = vmatprep.mubr.f32.mxu0 0.0
        %529 = vmatmul.mubr.f32.gmra.mrb[0].mxu0 %v348
        %v530 = vpop.f32.mrb[0].mxu0
        %v531 = vadd.f32 0.0, %v530
        %v532 = vpop.f32.mrb[0].mxu0
        %v533 = vadd.f32 0.0, %v532
        %534 = vmatprep.mubr.f32.mxu0 0.0
        %535 = vmatmul.mubr.f32.gmra.mrb[0].mxu0 %v351
        %v536 = vpop.f32.mrb[0].mxu0
        %v537 = vadd.f32 0.0, %v536
        %v538 = vpop.f32.mrb[0].mxu0
        %v539 = vadd.f32 0.0, %v538
        %540 = vmatprep.mubr.f32.mxu0 0.0
        %541 = vmatmul.mubr.f32.gmra.mrb[0].mxu0 %v354
        %v542 = vpop.f32.mrb[0].mxu0
        %v543 = vadd.f32 0.0, %v542
        %v544 = vpop.f32.mrb[0].mxu0
        %v545 = vadd.f32 0.0, %v544
        %546 = vmatprep.mubr.f32.mxu0 0.0
        %547 = vmatmul.mubr.f32.gmra.mrb[0].mxu0 %v357
        %v548 = vpop.f32.mrb[0].mxu0
        %v549 = vadd.f32 0.0, %v548
        %v550 = vpop.f32.mrb[0].mxu0
        %v551 = vadd.f32 0.0, %v550
        %552 = vmatprep.mubr.f32.mxu0 0.0
        %553 = vmatmul.mubr.f32.gmra.mrb[0].mxu0 %v360
        %v554 = vpop.f32.mrb[0].mxu0
        %v555 = vadd.f32 0.0, %v554
        %v556 = vpop.f32.mrb[0].mxu0
        %v557 = vadd.f32 0.0, %v556
        %558 = vmatprep.mubr.f32.mxu0 0.0
        %559 = vmatmul.mubr.f32.gmra.mrb[0].mxu0 %v363
        %v560 = vpop.f32.mrb[0].mxu0
        %v561 = vadd.f32 0.0, %v560
        %v562 = vpop.f32.mrb[0].mxu0
        %v563 = vadd.f32 0.0, %v562
        %564 = vmatprep.mubr.f32.mxu0 0.0
        %565 = vmatmul.mubr.f32.gmra.mrb[0].mxu0 %v366
        %v566 = vpop.f32.mrb[0].mxu0
        %v567 = vadd.f32 0.0, %v566
        %v568 = vpop.f32.mrb[0].mxu0
        %v569 = vadd.f32 0.0, %v568
        %570 = vmatprep.mubr.f32.mxu0 0.0
        %571 = vmatmul.mubr.f32.gmra.mrb[0].mxu0 %v369
        %v572 = vpop.f32.mrb[0].mxu0
        %v573 = vadd.f32 0.0, %v572
        %v574 = vpop.f32.mrb[0].mxu0
        %v575 = vadd.f32 0.0, %v574
        %576 = vmatprep.mubr.f32.mxu0 0.0
        %577 = vmatmul.mubr.f32.gmra.mrb[0].mxu0 %v372
        %v578 = vpop.f32.mrb[0].mxu0
        %v579 = vadd.f32 0.0, %v578
        %v580 = vpop.f32.mrb[0].mxu0
        %v581 = vadd.f32 0.0, %v580
        %582 = vmatprep.mubr.f32.mxu0 0.0
        %583 = vmatmul.mubr.f32.gmra.mrb[0].mxu0 %v375
        %v584 = vpop.f32.mrb[0].mxu0
        %v585 = vadd.f32 0.0, %v584
        %v586 = vpop.f32.mrb[0].mxu0
        %v587 = vadd.f32 0.0, %v586
        %588 = vmatprep.mubr.f32.mxu0 0.0
        %589 = vmatmul.mubr.f32.gmra.mrb[0].mxu0 %v378
        %v590 = vpop.f32.mrb[0].mxu0
        %v591 = vadd.f32 0.0, %v590
        %v592 = vpop.f32.mrb[0].mxu0
        %v593 = vadd.f32 0.0, %v592
        %594 = vmatprep.mubr.f32.mxu0 0.0
        %595 = vmatmul.mubr.f32.gmra.mrb[0].mxu0 %v381
        %v596 = vpop.f32.mrb[0].mxu0
        %v597 = vadd.f32 0.0, %v596
        %v598 = vpop.f32.mrb[0].mxu0
        %v599 = vadd.f32 0.0, %v598
        %600 = vmatprep.mubr.f32.mxu0 0.0
        %601 = vmatmul.mubr.f32.gmra.mrb[0].mxu0 %v384
        %v602 = vpop.f32.mrb[0].mxu0
        %v603 = vadd.f32 0.0, %v602
        %v604 = vpop.f32.mrb[0].mxu0
        %v605 = vadd.f32 0.0, %v604
        %606 = vmatprep.mubr.f32.mxu0 0.0
        %607 = vmatmul.mubr.f32.gmra.mrb[0].mxu0 %v387
        %v608 = vpop.f32.mrb[0].mxu0
        %v609 = vadd.f32 0.0, %v608
        %v610 = vpop.f32.mrb[0].mxu0
        %v611 = vadd.f32 0.0, %v610
        %612 = vmatprep.mubr.f32.mxu0 0.0
        %613 = vmatmul.mubr.f32.gmra.mrb[0].mxu0 %v390
        %v614 = vpop.f32.mrb[0].mxu0
        %v615 = vadd.f32 0.0, %v614
        %v616 = vpop.f32.mrb[0].mxu0
        %v617 = vadd.f32 0.0, %v616
        %618 = vmatprep.mubr.f32.mxu0 0.0
        %619 = vmatmul.mubr.f32.gmra.mrb[0].mxu0 %v393
        %v620 = vpop.f32.mrb[0].mxu0
        %v621 = vadd.f32 0.0, %v620
        %v622 = vpop.f32.mrb[0].mxu0
        %v623 = vadd.f32 0.0, %v622
        %624 = vmatprep.mubr.f32.mxu0 0.0
        %625 = vmatmul.mubr.f32.gmra.mrb[0].mxu0 %v396
        %v626 = vpop.f32.mrb[0].mxu0
        %v627 = vadd.f32 0.0, %v626
        %v628 = vpop.f32.mrb[0].mxu0
        %v629 = vadd.f32 0.0, %v628
        %630 = vmatprep.mubr.f32.mxu0 0.0
        %631 = vmatmul.mubr.f32.gmra.mrb[0].mxu0 %v399
        %v632 = vpop.f32.mrb[0].mxu0
        %v633 = vadd.f32 0.0, %v632
        %v634 = vpop.f32.mrb[0].mxu0
        %v635 = vadd.f32 0.0, %v634
        %636 = vmatprep.mubr.f32.mxu0 0.0
        %637 = vmatmul.mubr.f32.gmra.mrb[0].mxu0 %v402
        %v638 = vpop.f32.mrb[0].mxu0
        %v639 = vadd.f32 0.0, %v638
        %v640 = vpop.f32.mrb[0].mxu0
        %v641 = vadd.f32 0.0, %v640
        %642 = vmatprep.mubr.f32.mxu0 0.0
        %643 = vmatmul.mubr.f32.gmra.mrb[0].mxu0 %v405
        %v644 = vpop.f32.mrb[0].mxu0
        %v645 = vadd.f32 0.0, %v644
        %v646 = vpop.f32.mrb[0].mxu0
        %v647 = vadd.f32 0.0, %v646
        %648 = vmatprep.mubr.f32.mxu0 0.0
        %649 = vmatmul.mubr.f32.gmra.mrb[0].mxu0 %v408
        %v650 = vpop.f32.mrb[0].mxu0
        %v651 = vadd.f32 0.0, %v650
        %v652 = vpop.f32.mrb[0].mxu0
        %v653 = vadd.f32 0.0, %v652
        %654 = vmatprep.mubr.f32.mxu0 0.0
        %655 = vmatmul.mubr.f32.gmra.mrb[0].mxu0 %v411
        %v656 = vpop.f32.mrb[0].mxu0
        %v657 = vadd.f32 0.0, %v656
        %v658 = vpop.f32.mrb[0].mxu0
        %v659 = vadd.f32 0.0, %v658
        %660 = vmatprep.mubr.f32.mxu0 0.0
        %661 = vmatmul.mubr.f32.gmra.mrb[0].mxu0 %v414
        %v662 = vpop.f32.mrb[0].mxu0
        %v663 = vadd.f32 0.0, %v662
        %v664 = vpop.f32.mrb[0].mxu0
        %v665 = vadd.f32 0.0, %v664
        %666 = vmatprep.mubr.f32.mxu0 0.0
        %667 = vmatmul.mubr.f32.gmra.mrb[0].mxu0 %v417
        %v668 = vpop.f32.mrb[0].mxu0
        %v669 = vadd.f32 0.0, %v668
        %v670 = vpop.f32.mrb[0].mxu0
        %v671 = vadd.f32 0.0, %v670
        %672 = vmatprep.mubr.f32.mxu0 0.0
        %673 = vmatmul.mubr.f32.gmra.mrb[0].mxu0 %v420
        %v674 = vpop.f32.mrb[0].mxu0
        %v675 = vadd.f32 0.0, %v674
        %v676 = vpop.f32.mrb[0].mxu0
        %v677 = vadd.f32 0.0, %v676
        %678 = vdwg.mxu0
        %v679 = vld [vmem:[#allocation2] sm:$0x3]
        %v680 = vmax.f32 %v489, %v501
        %v681 = vmax.f32 %v495, %v507
        %v682 = vmax.f32 %v680, %v513
        %v683 = vmax.f32 %v681, %v519
        %v684 = vmax.f32 %v682, %v525
        %v685 = vmax.f32 %v683, %v531
        %v686 = vmax.f32 %v684, %v537
        %v687 = vmax.f32 %v685, %v543
        %v688 = vmax.f32 %v686, %v549
        %v689 = vmax.f32 %v687, %v555
        %v690 = vmax.f32 %v688, %v561
        %v691 = vmax.f32 %v689, %v567
        %v692 = vmax.f32 %v690, %v573
        %v693 = vmax.f32 %v691, %v579
        %v694 = vmax.f32 %v692, %v585
        %v695 = vmax.f32 %v693, %v591
        %v696 = vmax.f32 %v694, %v597
        %v697 = vmax.f32 %v695, %v603
        %v698 = vmax.f32 %v696, %v609
        %v699 = vmax.f32 %v697, %v615
        %v700 = vmax.f32 %v698, %v621
        %v701 = vmax.f32 %v699, %v627
        %v702 = vmax.f32 %v700, %v633
        %v703 = vmax.f32 %v701, %v639
        %v704 = vmax.f32 %v702, %v645
        %v705 = vmax.f32 %v703, %v651
        %v706 = vmax.f32 %v704, %v657
        %v707 = vmax.f32 %v705, %v663
        %v708 = vmax.f32 %v706, %v669
        %v709 = vmax.f32 %v707, %v675
        %v710 = vmax.f32 %v708, %v709
        %v711 = vrot.slane %v710, 4
        %v712 = vmax.f32 %v710, %v711
        %v713 = vrot.slane %v712, 2
        %v714 = vmax.f32 %v712, %v713
        %v715 = vrot.slane %v714, 1
        %v716 = vmax.f32 %v714, %v715
        %v717 = vmax.f32 %v491, %v503
        %v718 = vmax.f32 %v497, %v509
        %v719 = vmax.f32 %v717, %v515
        %v720 = vmax.f32 %v718, %v521
        %v721 = vmax.f32 %v719, %v527
        %v722 = vmax.f32 %v720, %v533
        %v723 = vmax.f32 %v721, %v539
        %v724 = vmax.f32 %v722, %v545
        %v725 = vmax.f32 %v723, %v551
        %v726 = vmax.f32 %v724, %v557
        %v727 = vmax.f32 %v725, %v563
        %v728 = vmax.f32 %v726, %v569
        %v729 = vmax.f32 %v727, %v575
        %v730 = vmax.f32 %v728, %v581
        %v731 = vmax.f32 %v729, %v587
        %v732 = vmax.f32 %v730, %v593
        %v733 = vmax.f32 %v731, %v599
        %v734 = vmax.f32 %v732, %v605
        %v735 = vmax.f32 %v733, %v611
        %v736 = vmax.f32 %v734, %v617
        %v737 = vmax.f32 %v735, %v623
        %v738 = vmax.f32 %v736, %v629
        %v739 = vmax.f32 %v737, %v635
        %v740 = vmax.f32 %v738, %v641
        %v741 = vmax.f32 %v739, %v647
        %v742 = vmax.f32 %v740, %v653
        %v743 = vmax.f32 %v741, %v659
        %v744 = vmax.f32 %v742, %v665
        %v745 = vmax.f32 %v743, %v671
        %v746 = vmax.f32 %v744, %v677
        %v747 = vmax.f32 %v745, %v746
        %v748 = vrot.slane %v747, 4
        %v749 = vmax.f32 %v747, %v748
        %v750 = vrot.slane %v749, 2
        %v751 = vmax.f32 %v749, %v750
        %v752 = vrot.slane %v751, 1
        %v753 = vmax.f32 %v751, %v752
        %v756 = vcombine.low %v716, %v753
        %v758 = vunpack.c.l.s4 1966171168
        %v759 = vunpack.c.0.s8 %v758
        %v760 = vlaneseq
        %v761 = vshrl.u32 %v760, 7
        %v762 = vsub.s32 %v759, %v761
        %v763 = vrot.slane %v756, %v762
        %v765 = vunpack.c.l.s4 1966171168
        %v766 = vunpack.c.0.s8 %v765
        %v767 = vlaneseq
        %v768 = vshrl.u32 %v767, 7
        %v769 = vsub.s32 %v766, %v768
        %v770 = vrot.slane %v763, %v769
        %v772 = vmax.f32 %v679, %v770
        %v773 = vsub.f32 %v679, %v772
        %v774 = vmul.f32 %v773, 1.442695
        %v775 = vpow.pop %v774
        %v777 = vlaneseq
        %v778 = vshrl.u32 %v777, 7
        %v779 = vsub.s32 0, %v778
        %v780 = vrot.slane %v772, %v779
        %v781 = vlaneseq
        %v782 = vshrl.u32 %v781, 7
        %v783 = vsub.s32 1, %v782
        %v784 = vrot.slane %v772, %v783
        %v787 = vsub.f32 %v489, %v780
        %v788 = vsub.f32 %v491, %v784
        %v789 = vsub.f32 %v495, %v780
        %v790 = vsub.f32 %v497, %v784
        %v791 = vsub.f32 %v501, %v780
        %v792 = vsub.f32 %v503, %v784
        %v793 = vsub.f32 %v507, %v780
        %v794 = vsub.f32 %v509, %v784
        %v795 = vsub.f32 %v513, %v780
        %v796 = vsub.f32 %v515, %v784
        %v797 = vsub.f32 %v519, %v780
        %v798 = vsub.f32 %v521, %v784
        %v799 = vsub.f32 %v525, %v780
        %v800 = vsub.f32 %v527, %v784
        %v801 = vsub.f32 %v531, %v780
        %v802 = vsub.f32 %v533, %v784
        %v803 = vsub.f32 %v537, %v780
        %v804 = vsub.f32 %v539, %v784
        %v805 = vsub.f32 %v543, %v780
        %v806 = vsub.f32 %v545, %v784
        %v807 = vsub.f32 %v549, %v780
        %v808 = vsub.f32 %v551, %v784
        %v809 = vsub.f32 %v555, %v780
        %v810 = vsub.f32 %v557, %v784
        %v811 = vsub.f32 %v561, %v780
        %v812 = vsub.f32 %v563, %v784
        %v813 = vsub.f32 %v567, %v780
        %v814 = vsub.f32 %v569, %v784
        %v815 = vsub.f32 %v573, %v780
        %v816 = vsub.f32 %v575, %v784
        %v817 = vsub.f32 %v579, %v780
        %v818 = vsub.f32 %v581, %v784
        %v819 = vsub.f32 %v585, %v780
        %v820 = vsub.f32 %v587, %v784
        %v821 = vsub.f32 %v591, %v780
        %v822 = vsub.f32 %v593, %v784
        %v823 = vsub.f32 %v597, %v780
        %v824 = vsub.f32 %v599, %v784
        %v825 = vsub.f32 %v603, %v780
        %v826 = vsub.f32 %v605, %v784
        %v827 = vsub.f32 %v609, %v780
        %v828 = vsub.f32 %v611, %v784
        %v829 = vsub.f32 %v615, %v780
        %v830 = vsub.f32 %v617, %v784
        %v831 = vsub.f32 %v621, %v780
        %v832 = vsub.f32 %v623, %v784
        %v833 = vsub.f32 %v627, %v780
        %v834 = vsub.f32 %v629, %v784
        %v835 = vsub.f32 %v633, %v780
        %v836 = vsub.f32 %v635, %v784
        %v837 = vsub.f32 %v639, %v780
        %v838 = vsub.f32 %v641, %v784
        %v839 = vsub.f32 %v645, %v780
        %v840 = vsub.f32 %v647, %v784
        %v841 = vsub.f32 %v651, %v780
        %v842 = vsub.f32 %v653, %v784
        %v843 = vsub.f32 %v657, %v780
        %v844 = vsub.f32 %v659, %v784
        %v845 = vsub.f32 %v663, %v780
        %v846 = vsub.f32 %v665, %v784
        %v847 = vsub.f32 %v669, %v780
        %v848 = vsub.f32 %v671, %v784
        %v849 = vsub.f32 %v675, %v780
        %v850 = vsub.f32 %v677, %v784
        %v851 = vmul.f32 %v787, 1.442695
        %v852 = vpow.pop %v851
        %v853 = vmul.f32 %v788, 1.442695
        %v854 = vpow.pop %v853
        %v855 = vmul.f32 %v789, 1.442695
        %v856 = vpow.pop %v855
        %v857 = vmul.f32 %v790, 1.442695
        %v858 = vpow.pop %v857
        %v859 = vmul.f32 %v791, 1.442695
        %v860 = vpow.pop %v859
        %v861 = vmul.f32 %v792, 1.442695
        %v862 = vpow.pop %v861
        %v863 = vmul.f32 %v793, 1.442695
        %v864 = vpow.pop %v863
        %v865 = vmul.f32 %v794, 1.442695
        %v866 = vpow.pop %v865
        %v867 = vmul.f32 %v795, 1.442695
        %v868 = vpow.pop %v867
        %v869 = vmul.f32 %v796, 1.442695
        %v870 = vpow.pop %v869
        %v871 = vmul.f32 %v797, 1.442695
        %v872 = vpow.pop %v871
        %v873 = vmul.f32 %v798, 1.442695
        %v874 = vpow.pop %v873
        %v875 = vmul.f32 %v799, 1.442695
        %v876 = vpow.pop %v875
        %v877 = vmul.f32 %v800, 1.442695
        %v878 = vpow.pop %v877
        %v879 = vmul.f32 %v801, 1.442695
        %v880 = vpow.pop %v879
        %v881 = vmul.f32 %v802, 1.442695
        %v882 = vpow.pop %v881
        %v883 = vmul.f32 %v803, 1.442695
        %v884 = vpow.pop %v883
        %v885 = vmul.f32 %v804, 1.442695
        %v886 = vpow.pop %v885
        %v887 = vmul.f32 %v805, 1.442695
        %v888 = vpow.pop %v887
        %v889 = vmul.f32 %v806, 1.442695
        %v890 = vpow.pop %v889
        %v891 = vmul.f32 %v807, 1.442695
        %v892 = vpow.pop %v891
        %v893 = vmul.f32 %v808, 1.442695
        %v894 = vpow.pop %v893
        %v895 = vmul.f32 %v809, 1.442695
        %v896 = vpow.pop %v895
        %v897 = vmul.f32 %v810, 1.442695
        %v898 = vpow.pop %v897
        %v899 = vmul.f32 %v811, 1.442695
        %v900 = vpow.pop %v899
        %v901 = vmul.f32 %v812, 1.442695
        %v902 = vpow.pop %v901
        %v903 = vmul.f32 %v813, 1.442695
        %v904 = vpow.pop %v903
        %v905 = vmul.f32 %v814, 1.442695
        %v906 = vpow.pop %v905
        %v907 = vmul.f32 %v815, 1.442695
        %v908 = vpow.pop %v907
        %v909 = vmul.f32 %v816, 1.442695
        %v910 = vpow.pop %v909
        %v911 = vmul.f32 %v817, 1.442695
        %v912 = vpow.pop %v911
        %v913 = vmul.f32 %v818, 1.442695
        %v914 = vpow.pop %v913
        %v915 = vmul.f32 %v819, 1.442695
        %v916 = vpow.pop %v915
        %v917 = vmul.f32 %v820, 1.442695
        %v918 = vpow.pop %v917
        %v919 = vmul.f32 %v821, 1.442695
        %v920 = vpow.pop %v919
        %v921 = vmul.f32 %v822, 1.442695
        %v922 = vpow.pop %v921
        %v923 = vmul.f32 %v823, 1.442695
        %v924 = vpow.pop %v923
        %v925 = vmul.f32 %v824, 1.442695
        %v926 = vpow.pop %v925
        %v927 = vmul.f32 %v825, 1.442695
        %v928 = vpow.pop %v927
        %v929 = vmul.f32 %v826, 1.442695
        %v930 = vpow.pop %v929
        %v931 = vmul.f32 %v827, 1.442695
        %v932 = vpow.pop %v931
        %v933 = vmul.f32 %v828, 1.442695
        %v934 = vpow.pop %v933
        %v935 = vmul.f32 %v829, 1.442695
        %v936 = vpow.pop %v935
        %v937 = vmul.f32 %v830, 1.442695
        %v938 = vpow.pop %v937
        %v939 = vmul.f32 %v831, 1.442695
        %v940 = vpow.pop %v939
        %v941 = vmul.f32 %v832, 1.442695
        %v942 = vpow.pop %v941
        %v943 = vmul.f32 %v833, 1.442695
        %v944 = vpow.pop %v943
        %v945 = vmul.f32 %v834, 1.442695
        %v946 = vpow.pop %v945
        %v947 = vmul.f32 %v835, 1.442695
        %v948 = vpow.pop %v947
        %v949 = vmul.f32 %v836, 1.442695
        %v950 = vpow.pop %v949
        %v951 = vmul.f32 %v837, 1.442695
        %v952 = vpow.pop %v951
        %v953 = vmul.f32 %v838, 1.442695
        %v954 = vpow.pop %v953
        %v955 = vmul.f32 %v839, 1.442695
        %v956 = vpow.pop %v955
        %v957 = vmul.f32 %v840, 1.442695
        %v958 = vpow.pop %v957
        %v959 = vmul.f32 %v841, 1.442695
        %v960 = vpow.pop %v959
        %v961 = vmul.f32 %v842, 1.442695
        %v962 = vpow.pop %v961
        %v963 = vmul.f32 %v843, 1.442695
        %v964 = vpow.pop %v963
        %v965 = vmul.f32 %v844, 1.442695
        %v966 = vpow.pop %v965
        %v967 = vmul.f32 %v845, 1.442695
        %v968 = vpow.pop %v967
        %v969 = vmul.f32 %v846, 1.442695
        %v970 = vpow.pop %v969
        %v971 = vmul.f32 %v847, 1.442695
        %v972 = vpow.pop %v971
        %v973 = vmul.f32 %v848, 1.442695
        %v974 = vpow.pop %v973
        %v975 = vmul.f32 %v849, 1.442695
        %v976 = vpow.pop %v975
        %v977 = vmul.f32 %v850, 1.442695
        %v978 = vpow.pop %v977
        %v979 = vld [vmem:[#allocation3] sm:$0x3]
        %v980 = vmul.f32 %v775, %v979
        %v981 = vadd.f32 %v852, %v856
        %v982 = vadd.f32 %v981, %v860
        %v983 = vadd.f32 %v982, %v864
        %v984 = vadd.f32 %v983, %v868
        %v985 = vadd.f32 %v984, %v872
        %v986 = vadd.f32 %v985, %v876
        %v987 = vadd.f32 %v986, %v880
        %v988 = vadd.f32 %v987, %v884
        %v989 = vadd.f32 %v988, %v888
        %v990 = vadd.f32 %v989, %v892
        %v991 = vadd.f32 %v990, %v896
        %v992 = vadd.f32 %v991, %v900
        %v993 = vadd.f32 %v992, %v904
        %v994 = vadd.f32 %v993, %v908
        %v995 = vadd.f32 %v994, %v912
        %v996 = vadd.f32 %v995, %v916
        %v997 = vadd.f32 %v996, %v920
        %v998 = vadd.f32 %v997, %v924
        %v999 = vadd.f32 %v998, %v928
        %v1000 = vadd.f32 %v999, %v932
        %v1001 = vadd.f32 %v1000, %v936
        %v1002 = vadd.f32 %v1001, %v940
        %v1003 = vadd.f32 %v1002, %v944
        %v1004 = vadd.f32 %v1003, %v948
        %v1005 = vadd.f32 %v1004, %v952
        %v1006 = vadd.f32 %v1005, %v956
        %v1007 = vadd.f32 %v1006, %v960
        %v1008 = vadd.f32 %v1007, %v964
        %v1009 = vadd.f32 %v1008, %v968
        %v1010 = vadd.f32 %v1009, %v972
        %v1011 = vadd.f32 %v1010, %v976
        %v1012 = vrot.slane %v1011, 4
        %v1013 = vadd.f32 %v1011, %v1012
        %v1014 = vrot.slane %v1013, 2
        %v1015 = vadd.f32 %v1013, %v1014
        %v1016 = vrot.slane %v1015, 1
        %v1017 = vadd.f32 %v1015, %v1016
        %v1018 = vadd.f32 %v854, %v858
        %v1019 = vadd.f32 %v1018, %v862
        %v1020 = vadd.f32 %v1019, %v866
        %v1021 = vadd.f32 %v1020, %v870
        %v1022 = vadd.f32 %v1021, %v874
        %v1023 = vadd.f32 %v1022, %v878
        %v1024 = vadd.f32 %v1023, %v882
        %v1025 = vadd.f32 %v1024, %v886
        %v1026 = vadd.f32 %v1025, %v890
        %v1027 = vadd.f32 %v1026, %v894
        %v1028 = vadd.f32 %v1027, %v898
        %v1029 = vadd.f32 %v1028, %v902
        %v1030 = vadd.f32 %v1029, %v906
        %v1031 = vadd.f32 %v1030, %v910
        %v1032 = vadd.f32 %v1031, %v914
        %v1033 = vadd.f32 %v1032, %v918
        %v1034 = vadd.f32 %v1033, %v922
        %v1035 = vadd.f32 %v1034, %v926
        %v1036 = vadd.f32 %v1035, %v930
        %v1037 = vadd.f32 %v1036, %v934
        %v1038 = vadd.f32 %v1037, %v938
        %v1039 = vadd.f32 %v1038, %v942
        %v1040 = vadd.f32 %v1039, %v946
        %v1041 = vadd.f32 %v1040, %v950
        %v1042 = vadd.f32 %v1041, %v954
        %v1043 = vadd.f32 %v1042, %v958
        %v1044 = vadd.f32 %v1043, %v962
        %v1045 = vadd.f32 %v1044, %v966
        %v1046 = vadd.f32 %v1045, %v970
        %v1047 = vadd.f32 %v1046, %v974
        %v1048 = vadd.f32 %v1047, %v978
        %v1049 = vrot.slane %v1048, 4
        %v1050 = vadd.f32 %v1048, %v1049
        %v1051 = vrot.slane %v1050, 2
        %v1052 = vadd.f32 %v1050, %v1051
        %v1053 = vrot.slane %v1052, 1
        %v1054 = vadd.f32 %v1052, %v1053
        %v1057 = vcombine.low %v1017, %v1054
        %v1059 = vunpack.c.l.s4 1966171168
        %v1060 = vunpack.c.0.s8 %v1059
        %v1061 = vlaneseq
        %v1062 = vshrl.u32 %v1061, 7
        %v1063 = vsub.s32 %v1060, %v1062
        %v1064 = vrot.slane %v1057, %v1063
        %v1066 = vunpack.c.l.s4 1966171168
        %v1067 = vunpack.c.0.s8 %v1066
        %v1068 = vlaneseq
        %v1069 = vshrl.u32 %v1068, 7
        %v1070 = vsub.s32 %v1067, %v1069
        %v1071 = vrot.slane %v1064, %v1070
        %v1073 = vadd.f32 %v980, %v1071
        %v1074 = vlaneseq
        %vm1075 = vcmp.ge.s32.totalorder %v1074, 0
        %vm1076 = vcmp.lt.s32.totalorder %v1074, 256
        %vm1077 = vmand %vm1075, %vm1076
        %1078 = vst.msk [vmem:[#allocation3] sm:$0x3] %vm1077, %v1073
        %1079 = vst.msk [vmem:[#allocation2] sm:$0x3] %vm1077, %v772
        %v1080 = vld [vmem:[#allocation4] sm:$0xff]
        %v1082 = vlaneseq
        %v1083 = vshrl.u32 %v1082, 7
        %v1084 = vsub.s32 0, %v1083
        %v1085 = vrot.slane %v775, %v1084
        %v1086 = vlaneseq
        %v1087 = vshrl.u32 %v1086, 7
        %v1088 = vsub.s32 1, %v1087
        %v1089 = vrot.slane %v775, %v1088
        %v1093 = vcombine.high %v1080, %v1080
        %v1095 = vmul.f32 %v1085, %v1080
        %v1096 = vmul.f32 %v1089, %v1093
        %v1098 = vcombine.high %v324, %v324
        %1100 = vmatprep.subr.mxu0 %v854
        %1101 = vmatpush1.msra.mxu0 %v852
        %1102 = vmatprep.subr.mxu0 %v858
        %1103 = vmatpush1.msra.mxu0 %v856
        %1104 = vmatprep.subr.mxu0 %v862
        %1105 = vmatpush1.msra.mxu0 %v860
        %1106 = vmatprep.subr.mxu0 %v866
        %1107 = vmatpush1.msra.mxu0 %v864
        %1108 = vmatprep.subr.mxu0 %v870
        %1109 = vmatpush1.msra.mxu0 %v868
        %1110 = vmatprep.subr.mxu0 %v874
        %1111 = vmatpush1.msra.mxu0 %v872
        %1112 = vmatprep.subr.mxu0 %v878
        %1113 = vmatpush1.msra.mxu0 %v876
        %1114 = vmatprep.subr.mxu0 %v882
        %1115 = vmatpush1.msra.mxu0 %v880
        %1116 = vmatprep.subr.mxu0 %v886
        %1117 = vmatpush1.msra.mxu0 %v884
        %1118 = vmatprep.subr.mxu0 %v890
        %1119 = vmatpush1.msra.mxu0 %v888
        %1120 = vmatprep.subr.mxu0 %v894
        %1121 = vmatpush1.msra.mxu0 %v892
        %1122 = vmatprep.subr.mxu0 %v898
        %1123 = vmatpush1.msra.mxu0 %v896
        %1124 = vmatprep.subr.mxu0 %v902
        %1125 = vmatpush1.msra.mxu0 %v900
        %1126 = vmatprep.subr.mxu0 %v906
        %1127 = vmatpush1.msra.mxu0 %v904
        %1128 = vmatprep.subr.mxu0 %v910
        %1129 = vmatpush1.msra.mxu0 %v908
        %1130 = vmatprep.subr.mxu0 %v914
        %1131 = vmatpush1.msra.mxu0 %v912
        %1132 = vmatprep.subr.mxu0 %v918
        %1133 = vmatpush1.msra.mxu0 %v916
        %1134 = vmatprep.subr.mxu0 %v922
        %1135 = vmatpush1.msra.mxu0 %v920
        %1136 = vmatprep.subr.mxu0 %v926
        %1137 = vmatpush1.msra.mxu0 %v924
        %1138 = vmatprep.subr.mxu0 %v930
        %1139 = vmatpush1.msra.mxu0 %v928
        %1140 = vmatprep.subr.mxu0 %v934
        %1141 = vmatpush1.msra.mxu0 %v932
        %1142 = vmatprep.subr.mxu0 %v938
        %1143 = vmatpush1.msra.mxu0 %v936
        %1144 = vmatprep.subr.mxu0 %v942
        %1145 = vmatpush1.msra.mxu0 %v940
        %1146 = vmatprep.subr.mxu0 %v946
        %1147 = vmatpush1.msra.mxu0 %v944
        %1148 = vmatprep.subr.mxu0 %v950
        %1149 = vmatpush1.msra.mxu0 %v948
        %1150 = vmatprep.subr.mxu0 %v954
        %1151 = vmatpush1.msra.mxu0 %v952
        %1152 = vmatprep.subr.mxu0 %v958
        %1153 = vmatpush1.msra.mxu0 %v956
        %1154 = vmatprep.subr.mxu0 %v962
        %1155 = vmatpush1.msra.mxu0 %v960
        %1156 = vmatprep.subr.mxu0 %v966
        %1157 = vmatpush1.msra.mxu0 %v964
        %1158 = vmatprep.subr.mxu0 %v970
        %1159 = vmatpush1.msra.mxu0 %v968
        %1160 = vmatprep.subr.mxu0 %v974
        %1161 = vmatpush1.msra.mxu0 %v972
        %1162 = vmatprep.subr.mxu0 %v978
        %1163 = vmatpush1.msra.mxu0 %v976
        %1164 = vmatprep.mubr.f32.mxu0 %v1098
        %1165 = vmatmul.mubr.f32.gmra.mrb[0].mxu0 %v324
        %v1166 = vpop.f32.mrb[0].mxu0
        %v1167 = vadd.f32 0.0, %v1166
        %v1168 = vpop.f32.mrb[0].mxu0
        %v1169 = vadd.f32 0.0, %v1168
        %1170 = vdwg.mxu0
        %v1171 = vadd.f32 %v1095, %v1167
        %v1172 = vadd.f32 %v1096, %v1169
        %v1175 = vcombine.low %v1171, %v1172
        %1177 = vst [vmem:[#allocation4] sm:$0xff] %v1175
        // Predicated region
        $region37: #{tpu_custom_call.1} parent=31 // pred_check
          %p1178 = pneg %p279
        $region38: #{tpu_custom_call.1} parent=31 // pred_check_branch
          %1180 = sbr.rel (%p1178) target = $region40
        $region39: #{tpu_custom_call.1} parent=31 // pred_region
          %v1181 = vld [vmem:[#allocation3] sm:$0x3]
          %v1182 = vrcp.pop %v1181
          %v1183 = vld [vmem:[#allocation4] sm:$0xff]
          %v1185 = vlaneseq
          %v1186 = vshrl.u32 %v1185, 7
          %v1187 = vsub.s32 0, %v1186
          %v1188 = vrot.slane %v1182, %v1187
          %v1189 = vlaneseq
          %v1190 = vshrl.u32 %v1189, 7
          %v1191 = vsub.s32 1, %v1190
          %v1192 = vrot.slane %v1182, %v1191
          %v1193 = vcombine.low %v1188, %v1192
          %v1195 = vmul.f32 %v1183, %v1193
          %1196 = vst [vmem:[%s247] sm:$0xff] %v1195
        $region40: #{tpu_custom_call.1} parent=31 // pred_fallthru
          _
        %s1197 = sand.u32 %s130, 1
        %s1198 = scalar_lea.sflag [#allocation6], %s1197
        %s1199 = sand.u32 %s130, 1
        %s1200 = smul.addr %s1199, 8
        %s1201 = scalar_lea.vmem [#allocation5], %s1200
        // Predicated region
        $region41: #{tpu_custom_call.1} parent=31 // pred_check
          %p1202 = pneg %p140
        $region42: #{tpu_custom_call.1} parent=31 // pred_check_branch
          %1204 = sbr.rel (%p1202) target = $region44
        $region43: #{tpu_custom_call.1} parent=31 // pred_region
          %s1205 = smul.u32 2, %s23
          %s1207 = ssub.s32 128, 128
          %1208 = vsyncadd %s1198, %s1207
          %s1209 = smul.addr %s22, 2
          %s1210 = sadd.s32 %s1205, %s1209
          %s1211 = smul.addr %s1210, 64
          %s1212 = scalar_lea.hbm %s3, %s1211
          %s1214 = sshll.u32 %s1201, 4
          %s1215 = int_to_ptr.vmem [resolvable:$true] %s1214
          %1217 = dma.vmem_to_hbm [thread:$0]  %s1215, 128, %s1212, %s1198
        $region44: #{tpu_custom_call.1} parent=31 // pred_fallthru
          _
      $region32: #{tpu_custom_call.1} parent=5 // pred_fallthru
        _
      %p1218 = scmp.le.s32.totalorder 2, %s12
      // Predicated region
      $region45: #{tpu_custom_call.1} parent=5 // pred_check
        %p1219 = pneg %p1218
      $region46: #{tpu_custom_call.1} parent=5 // pred_check_branch
        %1221 = sbr.rel (%p1219) target = $region48
      $region47: #{tpu_custom_call.1} parent=5 // pred_region
        %s1222 = ssub.s32 %s12, 2
        // Predicated region
        $region49: #{tpu_custom_call.1} parent=47 // pred_check
          %p1223 = pneg %p146
        $region50: #{tpu_custom_call.1} parent=47 // pred_check_branch
          %1225 = sbr.rel (%p1223) target = $region52
        $region51: #{tpu_custom_call.1} parent=47 // pred_region
          %s1226 = sand.u32 %s131, 1
          %s1227 = scalar_lea.sflag [#allocation6], %s1226
          %s1228 = sand.u32 %s131, 1
          %s1229 = smul.addr %s1228, 8
          %s1230 = scalar_lea.vmem [#allocation5], %s1229
          %1231 = dma.done %s1227, 128
        $region52: #{tpu_custom_call.1} parent=47 // pred_fallthru
          _
      $region48: #{tpu_custom_call.1} parent=5 // pred_fallthru
        _
    $region6: #{tpu_custom_call.1} parent=1 // loop_footer
      %s16 = sadd.s32 1, %s12
    $region7: #{tpu_custom_call.1} parent=1 // loop_footer_branch
      %11 = sbr.rel target = $region3
    $region8: #{tpu_custom_call.1} parent=1 // loop_exit
      _
    %1232 = vsyncpa [#allocation6], 1
    %s1233 = scalar_lea.sflag [#allocation6], 1
    %1234 = vsyncpa %s1233, 1

</llo_original>
